<compile_context>
chip_gen: v5e
topology: v5e:2x2
jax: 0.10.0
libtpu: 0.0.40
codegen_flags: <defaults>
</compile_context>

<pallas_src>
import math

import jax
import jax.numpy as jnp
from jax import lax
from jax.experimental import pallas as pl
from jax.experimental.pallas import tpu as pltpu

COMPUTE_DTYPE = jnp.bfloat16


# ------------------------------ small helpers -------------------------------

def _pick_tile(n: int, preferred: int, granules=(128,)) -> int:
    """Largest tile <= preferred dividing n that is a multiple of a granule
    (lane dims: granules=(128,), sublane dims: granules=(128, 8)).
    Falls back to the full dim only when no granule-aligned divisor exists
    (full-extent blocks are always legal)."""
    preferred = max(min(preferred, n), 1)
    for g in granules:
        t = (preferred // g) * g
        while t >= g:
            if n % t == 0:
                return t
            t -= g
    return n


def _vmem_limit_bytes():
    # Budget ~half of physical VMEM so double-buffered tiles always fit
    # (v5e/v6e: 128 MiB, v7x: 64 MiB); fall back to the compiler default.
    try:
        cap = pltpu.get_tpu_info().vmem_capacity_bytes
        return int(min(max(cap // 2, 32 * 1024 * 1024), 96 * 1024 * 1024))
    except Exception:
        return None


def _compiler_params(dimension_semantics):
    kwargs = dict(dimension_semantics=dimension_semantics)
    limit = _vmem_limit_bytes()
    if limit is not None:
        kwargs["vmem_limit_bytes"] = limit
    return pltpu.CompilerParams(**kwargs)


# ------------------------- tiled / pipelined matmul --------------------------

def _matmul_kernel(x_ref, w_ref, o_ref, acc_ref):
    # Standard (tm, tk) @ (tk, tn) contraction; K axis innermost & "arbitrary".
    @pl.when(pl.program_id(2) == 0)
    def _():
        acc_ref[...] = jnp.zeros_like(acc_ref)

    acc_ref[...] += jnp.dot(x_ref[...], w_ref[...],
                            preferred_element_type=jnp.float32)

    @pl.when(pl.program_id(2) == pl.num_programs(2) - 1)
    def _():
        o_ref[...] = acc_ref[...].astype(o_ref.dtype)


def matmul_pallas(x2d: jax.Array, w_t: jax.Array, *, out_dtype=None,
                  tm=512, tn=512, tk=1024) -> jax.Array:
    """x2d (M, K) @ w_t (K, N); weights already stored in (K, N) layout at init."""
    M, K = x2d.shape
    K2, N = w_t.shape
    assert K == K2
    out_dtype = x2d.dtype if out_dtype is None else out_dtype
    tm = _pick_tile(M, tm, granules=(128, 8))   # sublane dim
    tn = _pick_tile(N, tn, granules=(128,))     # lane dim of w / out
    tk = _pick_tile(K, tk, granules=(128,))     # lane dim of x
    grid = (M // tm, N // tn, K // tk)
    return pl.pallas_call(
        _matmul_kernel,
        out_shape=jax.ShapeDtypeStruct((M, N), out_dtype),
        grid_spec=pltpu.PrefetchScalarGridSpec(
            num_scalar_prefetch=0,
            grid=grid,
            in_specs=[
                pl.BlockSpec((tm, tk), lambda i, j, k: (i, k)),
                pl.BlockSpec((tk, tn), lambda i, j, k: (k, j)),
            ],
            out_specs=pl.BlockSpec((tm, tn), lambda i, j, k: (i, j)),
            scratch_shapes=[pltpu.VMEM((tm, tn), jnp.float32)],
        ),
        compiler_params=_compiler_params(("parallel", "parallel", "arbitrary")),
    )(x2d, w_t)


# ------------------------ flash attention (GQA-aware) ------------------------

def _flash_attn_kernel(q_ref, k_ref, v_ref, bias_ref, o_ref,
                       m_sc, l_sc, acc_sc):
    ki = pl.program_id(3)

    @pl.when(ki == 0)
    def _():
        m_sc[...] = jnp.full_like(m_sc, -jnp.inf)
        l_sc[...] = jnp.zeros_like(l_sc)
        acc_sc[...] = jnp.zeros_like(acc_sc)

    n_rep, tq, dh = q_ref.shape[2], q_ref.shape[3], q_ref.shape[4]
    tk = k_ref.shape[2]
    # All n_rep query heads of this GQA group share one K/V tile; one big
    # (n_rep*tq, Dh) matmul fills the MXU instead of n_rep small ones.
    q = q_ref[...].reshape(n_rep * tq, dh)   # (n_rep*tq, Dh) bf16
    k = k_ref[...].reshape(tk, dh)           # (tk, Dh) bf16
    v = v_ref[...].reshape(tk, dh)           # (tk, Dh) bf16
    bias = bias_ref[...].reshape(1, tk)      # additive f32 key-padding bias

    # Softmax scale is pre-folded into q's RoPE tables -> no per-tile rescale.
    s = lax.dot_general(q, k, dimension_numbers=(((1,), (1,)), ((), ())),
                        preferred_element_type=jnp.float32) + bias

    m_prev = m_sc[...]                                        # (n_rep*tq, 1)
    m_new = jnp.maximum(m_prev, jnp.max(s, axis=-1, keepdims=True))
    alpha = jnp.exp(m_prev - m_new)
    p = jnp.exp(s - m_new)
    l_sc[...] = alpha * l_sc[...] + jnp.sum(p, axis=-1, keepdims=True)
    acc_sc[...] = alpha * acc_sc[...] + jnp.dot(
        p.astype(v.dtype), v, preferred_element_type=jnp.float32)
    m_sc[...] = m_new

    @pl.when(ki == pl.num_programs(3) - 1)
    def _():
        # NOTE: fully-masked query rows yield a uniform average over V (finite
        # additive bias) instead of the reference's NaN -- intentional, NaN-free.
        inv_l = pl.reciprocal(l_sc[...], approx=True)   # EUP slot, frees VALU
        o = (acc_sc[...] * inv_l).astype(o_ref.dtype)
        o_ref[...] = o.reshape(o_ref.shape)


def flash_attention_pallas(q5, k4, v4, bias):
    """q5: (B, Hkv, n_rep, S, Dh); k4/v4: (B, Hkv, S, Dh); bias: (B, 1, S) f32."""
    B, Hkv, n_rep, S, Dh = q5.shape
    tq = _pick_tile(S, 512, granules=(128, 8))   # bigger tq -> fewer K/V re-streams
    tk = _pick_tile(S, 256, granules=(128,))     # lane dim of scores / bias
    grid = (B, Hkv, S // tq, S // tk)
    nrq = n_rep * tq
    # TODO(synk): for B==1 on v7x, lead the grid with the qi axis (or flatten
    # B*Hkv) so both TensorCores get work; add pipeline_mode=pl.Buffered(3) on
    # the K/V specs if profiling shows exposed DMA on v5e.
    return pl.pallas_call(
        _flash_attn_kernel,
        out_shape=jax.ShapeDtypeStruct(q5.shape, q5.dtype),
        grid_spec=pltpu.PrefetchScalarGridSpec(
            num_scalar_prefetch=0,
            grid=grid,
            in_specs=[
                pl.BlockSpec((1, 1, n_rep, tq, Dh),
                             lambda b, h, qi, ki: (b, h, 0, qi, 0)),
                pl.BlockSpec((1, 1, tk, Dh), lambda b, h, qi, ki: (b, h, ki, 0)),
                pl.BlockSpec((1, 1, tk, Dh), lambda b, h, qi, ki: (b, h, ki, 0)),
                pl.BlockSpec((1, 1, tk), lambda b, h, qi, ki: (b, 0, ki)),
            ],
            out_specs=pl.BlockSpec((1, 1, n_rep, tq, Dh),
                                   lambda b, h, qi, ki: (b, h, 0, qi, 0)),
            scratch_shapes=[
                pltpu.VMEM((nrq, 1), jnp.float32),    # running max
                pltpu.VMEM((nrq, 1), jnp.float32),    # running denominator
                pltpu.VMEM((nrq, Dh), jnp.float32),   # f32 output accumulator
            ],
        ),
        compiler_params=_compiler_params(
            ("parallel", "parallel", "parallel", "arbitrary")),
    )(q5, k4, v4, bias)


# --------------------------- weights & RoPE (glue) ----------------------------

def precompute_freqs(head_dim: int, seqlen: int, theta: float = 10000.0):
    inv = 1.0 / (theta ** (jnp.arange(0, head_dim, 2, dtype=jnp.float32) / head_dim))
    t = jnp.arange(seqlen, dtype=jnp.float32)
    freqs = jnp.outer(t, inv)                 # (S, Dh/2)  == angle of freqs_cis
    return jnp.cos(freqs), jnp.sin(freqs)


def prepare_params(params, n_heads, n_kv_heads, head_dim,
                   compute_dtype=COMPUTE_DTYPE):
    """One-time weight preprocessing (done at init, never per forward):
      * permute wq/wk rows per head from interleaved to half-split order so RoPE
        becomes contiguous rotate-half math (same permutation on q and k keeps
        q.k exact; v / wo untouched),
      * fuse wq/wk/wv into one weight stored in (K, N) layout,
      * store wo in (K, N) layout,
      * cast to the bf16 compute dtype."""
    def permute_rows(w, n_h):                     # w: (n_h*head_dim, dim)
        w = w.reshape(n_h, head_dim, -1)
        perm = jnp.concatenate([jnp.arange(0, head_dim, 2),
                                jnp.arange(1, head_dim, 2)])
        return w[:, perm, :].reshape(n_h * head_dim, -1)

    wq = permute_rows(params["wq"], n_heads)
    wk = permute_rows(params["wk"], n_kv_heads)
    w_qkv_t = jnp.concatenate([wq, wk, params["wv"]], axis=0).T   # (dim, Nqkv)
    wo_t = params["wo"].T                                         # (H*Dh, dim)
    return {"w_qkv_t": w_qkv_t.astype(compute_dtype),
            "wo_t": wo_t.astype(compute_dtype)}


def rope_apply_half(x, cos, sin):
    # Half-split (rotate-half) RoPE; x features are pre-permuted at init.
    half = x.shape[-1] // 2
    xr, xi = x[..., :half], x[..., half:]
    c = cos[None, :, None, :]
    s = sin[None, :, None, :]
    return jnp.concatenate([xr * c - xi * s, xr * s + xi * c], axis=-1)


def rope_apply_interleaved(x, cos, sin):
    # Llama interleaved rope (reference semantics on unpermuted weights).
    B, S, H, Dh = x.shape
    xr = x[..., 0::2]
    xi = x[..., 1::2]
    c = cos[None, :, None, :]
    s = sin[None, :, None, :]
    out_r = xr * c - xi * s
    out_i = xr * s + xi * c
    return jnp.stack([out_r, out_i], axis=-1).reshape(B, S, H, Dh)


# ----------------------------- forward wrappers -------------------------------

def joint_attention_forward(prepared, x, x_mask, cos, sin, n_heads, n_kv_heads,
                            compute_dtype=COMPUTE_DTYPE):
    B, S, dim = x.shape
    head_dim = dim // n_heads
    n_rep = n_heads // n_kv_heads
    scale = math.sqrt(1.0 / head_dim)

    # Fused QKV projection (weight fused + transposed once at init).
    x2d = x.reshape(B * S, dim).astype(compute_dtype)
    qkv = matmul_pallas(x2d, prepared["w_qkv_t"])
    q_sz = n_heads * head_dim
    kv_sz = n_kv_heads * head_dim
    xq = qkv[:, :q_sz].reshape(B, S, n_heads, head_dim)
    xk = qkv[:, q_sz:q_sz + kv_sz].reshape(B, S, n_kv_heads, head_dim)
    xv = qkv[:, q_sz + kv_sz:].reshape(B, S, n_kv_heads, head_dim)

    # qk_norm=False -> Identity; RoPE in f32.  Softmax scale folded into q's
    # cos/sin tables (k stays unscaled).
    # TODO(synk): fuse RoPE + the (0,2,1,3) layout shuffle into the attention
    # prologue (and emit the attention output in (B,S,H,Dh)) to drop the
    # remaining full-tensor HBM round trips of glue.
    xq = rope_apply_half(xq.astype(jnp.float32), cos * scale, sin * scale)
    xk = rope_apply_half(xk.astype(jnp.float32), cos, sin)

    q = jnp.transpose(xq, (0, 2, 1, 3)).reshape(
        B, n_kv_heads, n_rep, S, head_dim).astype(compute_dtype)
    k = jnp.transpose(xk, (0, 2, 1, 3)).astype(compute_dtype)   # (B, Hkv, S, Dh)
    v = jnp.transpose(xv, (0, 2, 1, 3))                         # bf16 already

    # Additive key-padding bias (0 = attend, -1e30 = masked), lane-dense f32.
    bias = jnp.where(x_mask.astype(bool), 0.0, -1e30).astype(jnp.float32)
    bias = bias.reshape(B, 1, S)

    out = flash_attention_pallas(q, k, v, bias)       # (B, Hkv, n_rep, S, Dh)
    out = out.reshape(B, n_heads, S, head_dim)
    out = jnp.transpose(out, (0, 2, 1, 3)).reshape(B * S, n_heads * head_dim)
    y = matmul_pallas(out, prepared["wo_t"], out_dtype=jnp.float32)
    return y.reshape(B, S, dim).astype(x.dtype)


def reference_forward(params, x, x_mask, cos, sin, n_heads, n_kv_heads):
    """Pure-JAX f32 reference mirroring the PyTorch SDPA path (original weights,
    interleaved RoPE) -- also validates the half-split permutation trick."""
    B, S, dim = x.shape
    head_dim = dim // n_heads
    n_rep = n_heads // n_kv_heads
    xq = (x @ params["wq"].T).reshape(B, S, n_heads, head_dim)
    xk = (x @ params["wk"].T).reshape(B, S, n_kv_heads, head_dim)
    xv = (x @ params["wv"].T).reshape(B, S, n_kv_heads, head_dim)
    xq = rope_apply_interleaved(xq, cos, sin)
    xk = rope_apply_interleaved(xk, cos, sin)
    scale = math.sqrt(1.0 / head_dim)
    q = jnp.transpose(xq, (0, 2, 1, 3))
    k = jnp.repeat(jnp.transpose(xk, (0, 2, 1, 3)), n_rep, axis=1)
    v = jnp.repeat(jnp.transpose(xv, (0, 2, 1, 3)), n_rep, axis=1)
    s = jnp.einsum("bhqd,bhkd->bhqk", q, k) * scale
    m = x_mask.astype(bool)[:, None, None, :]
    s = jnp.where(m, s, -jnp.inf)
    p = jax.nn.softmax(s, axis=-1)
    o = jnp.einsum("bhqk,bhkd->bhqd", p, v)
    o = jnp.transpose(o, (0, 2, 1, 3)).reshape(B, S, n_heads * head_dim)
    return o @ params["wo"].T


# ----------------------------------- main -------------------------------------

if __name__ == "__main__":
    B, S = 2, 16
    dim, n_heads, n_kv_heads = 128, 4, 2
    head_dim = dim // n_heads

    key = jax.random.PRNGKey(0)
    k1, k2, k3, k4, k5 = jax.random.split(key, 5)
    wscale = dim ** -0.5
    init = lambda k, shape: wscale * jax.random.normal(k, shape, dtype=jnp.float32)
    params = {
        "wq": init(k1, (n_heads * head_dim, dim)),
        "wk": init(k2, (n_kv_heads * head_dim, dim)),
        "wv": init(k3, (n_kv_heads * head_dim, dim)),
        "wo": init(k4, (dim, n_heads * head_dim)),
    }

    x = jax.random.normal(k5, (B, S, dim), dtype=jnp.float32)
    # key-padding mask: last 4 positions of batch 1 masked out
    x_mask = jnp.ones((B, S), dtype=jnp.int32).at[1, 12:].set(0)
    cos, sin = precompute_freqs(head_dim, S)

    prepared = prepare_params(params, n_heads, n_kv_heads, head_dim)  # one-time init
    out = joint_attention_forward(prepared, x, x_mask, cos, sin,
                                  n_heads, n_kv_heads)
    out = jax.block_until_ready(out)

    # Reference on bf16-roundtripped inputs so the comparison isolates kernel
    # error (accumulation order, intermediate bf16 rounding, approx reciprocal)
    # from input quantization.
    rt = lambda a: a.astype(jnp.bfloat16).astype(jnp.float32)
    params_rt = {name: rt(w) for name, w in params.items()}
    ref = reference_forward(params_rt, rt(x), x_mask, cos, sin,
                            n_heads, n_kv_heads)

    assert out.shape == (B, S, dim)
    assert bool(jnp.allclose(out, ref, atol=2.5e-2, rtol=2.5e-2)), \
        "mismatch vs reference"

    print("KERNEL_OK")
</pallas_src>

<mosaic_0001>
module attributes {stable_mosaic.version = 11 : i64} {
  func.func @_matmul_kernel(%arg0: i32, %arg1: i32, %arg2: i32, %arg3: memref<32x128xbf16, #tpu.memory_space<vmem>>, %arg4: memref<128x256xbf16, #tpu.memory_space<vmem>>, %arg5: memref<32x256xbf16, #tpu.memory_space<vmem>>, %arg6: memref<32x256xf32, #tpu.memory_space<vmem>>) attributes {dimension_semantics = [#tpu.dimension_semantics<parallel>, #tpu.dimension_semantics<parallel>, #tpu.dimension_semantics<arbitrary>], iteration_bounds = array<i64: 1, 1, 1>, scalar_prefetch = 0 : i64, scratch_operands = 1 : i64, tpu.core_type = #tpu.core_type<tc>, window_params = [{transform_indices = @transform_0, window_bounds = array<i64: 32, 128>}, {transform_indices = @transform_1, window_bounds = array<i64: 128, 256>}, {transform_indices = @transform_2, window_bounds = array<i64: 32, 256>}]} {
    %c0_i32 = arith.constant 0 : i32
    %0 = arith.cmpi eq, %arg2, %c0_i32 : i32
    %1 = arith.extui %0 : i1 to i32
    %c0_i32_0 = arith.constant 0 : i32
    %2 = arith.cmpi ne, %1, %c0_i32_0 : i32
    scf.if %2 {
      %cst_10 = arith.constant 0.000000e+00 : f32
      %12 = vector.broadcast %cst_10 : f32 to vector<32x256xf32>
      %c0_11 = arith.constant 0 : index
      %c0_12 = arith.constant 0 : index
      %13 = vector.load %arg6[%c0_11, %c0_12] : memref<32x256xf32, #tpu.memory_space<vmem>>, vector<32x256xf32>
      tpu.vector_store %arg6[%c0_11, %c0_12], %12 {strides = array<i32>} : memref<32x256xf32, #tpu.memory_space<vmem>>, vector<32x256xf32>,
    } else {
    }
    %c0 = arith.constant 0 : index
    %c0_1 = arith.constant 0 : index
    %3 = vector.load %arg6[%c0, %c0_1] : memref<32x256xf32, #tpu.memory_space<vmem>>, vector<32x256xf32>
    %c0_2 = arith.constant 0 : index
    %c0_3 = arith.constant 0 : index
    %4 = vector.load %arg3[%c0_2, %c0_3] : memref<32x128xbf16, #tpu.memory_space<vmem>>, vector<32x128xbf16>
    %c0_4 = arith.constant 0 : index
    %c0_5 = arith.constant 0 : index
    %5 = vector.load %arg4[%c0_4, %c0_5] : memref<128x256xbf16, #tpu.memory_space<vmem>>, vector<128x256xbf16>
    %cst = arith.constant dense<0.000000e+00> : vector<32x256xf32>
    %6 = tpu.matmul %4, %5, %cst {dimension_numbers = #tpu.dot_dimension_numbers<[1], [0], [0], [1], [0, 0, 1, 1], [], []>} : vector<32x128xbf16>, vector<128x256xbf16>, vector<32x256xf32> -> vector<32x256xf32>
    %7 = arith.addf %3, %6 : vector<32x256xf32>
    %c0_6 = arith.constant 0 : index
    %c0_7 = arith.constant 0 : index
    %8 = vector.load %arg6[%c0_6, %c0_7] : memref<32x256xf32, #tpu.memory_space<vmem>>, vector<32x256xf32>
    tpu.vector_store %arg6[%c0_6, %c0_7], %7 {strides = array<i32>} : memref<32x256xf32, #tpu.memory_space<vmem>>, vector<32x256xf32>,
    %c0_i32_8 = arith.constant 0 : i32
    %9 = arith.cmpi eq, %arg2, %c0_i32_8 : i32
    %10 = arith.extui %9 : i1 to i32
    %c0_i32_9 = arith.constant 0 : i32
    %11 = arith.cmpi ne, %10, %c0_i32_9 : i32
    scf.if %11 {
      %c0_10 = arith.constant 0 : index
      %c0_11 = arith.constant 0 : index
      %12 = vector.load %arg6[%c0_10, %c0_11] : memref<32x256xf32, #tpu.memory_space<vmem>>, vector<32x256xf32>
      %13 = arith.truncf %12 : vector<32x256xf32> to vector<32x256xbf16>
      %c0_12 = arith.constant 0 : index
      %c0_13 = arith.constant 0 : index
      %14 = vector.load %arg5[%c0_12, %c0_13] : memref<32x256xbf16, #tpu.memory_space<vmem>>, vector<32x256xbf16>
      tpu.vector_store %arg5[%c0_12, %c0_13], %13 {strides = array<i32>} : memref<32x256xbf16, #tpu.memory_space<vmem>>, vector<32x256xbf16>,
    } else {
    }
    return
  }
  func.func @transform_0(%arg0: i32, %arg1: i32, %arg2: i32) -> (i32, i32) {
    %c0_i32 = arith.constant 0 : i32
    return %arg0, %arg2 : i32, i32
  }
  func.func @transform_1(%arg0: i32, %arg1: i32, %arg2: i32) -> (i32, i32) {
    %c0_i32 = arith.constant 0 : i32
    return %arg2, %arg1 : i32, i32
  }
  func.func @transform_2(%arg0: i32, %arg1: i32, %arg2: i32) -> (i32, i32) {
    %c0_i32 = arith.constant 0 : i32
    return %arg0, %arg1 : i32, i32
  }
}

</mosaic_0001>

<llo_original>
// kernel: tpu_custom_call.1
$region0: #{tpu_custom_call.1}
  #allocation0 [shape = 'u32[]', space=smem, size = 0x4, offset = 0x4, fixed_abs, tag = 'smem constant byte address 0x4 - core index']
  #allocation1 [shape = 'u32[72,128]{1,0:T(1,128)}', space=vmem, size = 0x9000, scoped, tag = 'internal scratch']
  #allocation2 [shape = 'f32[32,256]{1,0:T(8,128)}', space=vmem, size = 0x8000, scoped, tag = 'scratch operand']
  %s0 = inlined_call_operand.hbm [shape: bf16[32,128], index: 0, kind: input, shape index: {}]
  %s1 = inlined_call_operand.hbm [shape: bf16[128,256], index: 1, kind: input, shape index: {}]
  %s2 = inlined_call_operand.hbm [shape: bf16[32,256], index: 2, kind: output, shape index: {}]
  %s3 = sld [smem:[#allocation0]]
  $region34: #{tpu_custom_call.1} parent=0
    _
  %s5 = ssub.s32 1, %s3
  %s6 = scalar_select 0, %s5, %s3
  $region1: #{tpu_custom_call.1} parent=0
    #allocation3 [shape = 'u8[8192]{0}', space=vmem, size = 0x2000, scoped, tag = 'input window, operand 0, single buffered']
    #allocation4 [shape = 's32[1]{0}', space=sflag, size = 0x4, scoped, tag = 'scoped memory for tpu_custom_call.1']
    #allocation5 [shape = 's32[1]{0}', space=sflag, size = 0x4, scoped, tag = 'scoped memory for tpu_custom_call.1']
    #allocation6 [shape = 'u8[65536]{0}', space=vmem, size = 0x10000, scoped, tag = 'input window, operand 1, single buffered']
    #allocation7 [shape = 's32[1]{0}', space=sflag, size = 0x4, scoped, tag = 'scoped memory for tpu_custom_call.1']
    #allocation8 [shape = 'u8[16384]{0}', space=vmem, size = 0x4000, scoped, tag = 'output window, operand 0, single buffered']
    %7 = vsyncpa [#allocation4], 0
    %8 = vsyncpa [#allocation7], 0
    %9 = vsyncpa [#allocation5], 0
    // Predicated region
    $region2: #{tpu_custom_call.1} parent=1 // pred_check
      _
    $region3: #{tpu_custom_call.1} parent=1 // pred_check_branch
      %11 = sbr.rel (0) target = $region5
    $region4: #{tpu_custom_call.1} parent=1 // pred_region
      %13 = vsyncadd [#allocation4], 0
      %s14 = sshll.u32 %s0, 4
      %s15 = int_to_ptr.hbm [resolvable:$true] %s14
      %s16 = sshll.u32 [#allocation3], 4
      %s17 = int_to_ptr.vmem [resolvable:$true] %s16
      %22 = dma.hbm_to_vmem [thread:$0]  %s15, 256, %s17, [#allocation4], 64, 64, 4
    $region5: #{tpu_custom_call.1} parent=1 // pred_fallthru
      _
    // Predicated region
    $region6: #{tpu_custom_call.1} parent=1 // pred_check
      _
    $region7: #{tpu_custom_call.1} parent=1 // pred_check_branch
      %24 = sbr.rel (0) target = $region9
    $region8: #{tpu_custom_call.1} parent=1 // pred_region
      %26 = vsyncadd [#allocation7], 0
      %s27 = sshll.u32 %s1, 4
      %s28 = int_to_ptr.hbm [resolvable:$true] %s27
      %s29 = sshll.u32 [#allocation6], 4
      %s30 = int_to_ptr.vmem [resolvable:$true] %s29
      %35 = dma.hbm_to_vmem [thread:$0]  %s28, 2048, %s30, [#allocation7], 128, 128, 8
    $region9: #{tpu_custom_call.1} parent=1 // pred_fallthru
      _
    // Predicated region
    $region10: #{tpu_custom_call.1} parent=1 // pred_check
      _
    $region11: #{tpu_custom_call.1} parent=1 // pred_check_branch
      %37 = sbr.rel (0) target = $region13
    $region12: #{tpu_custom_call.1} parent=1 // pred_region
      %39 = dma.done [#allocation4], 256
    $region13: #{tpu_custom_call.1} parent=1 // pred_fallthru
      _
    // Predicated region
    $region14: #{tpu_custom_call.1} parent=1 // pred_check
      _
    $region15: #{tpu_custom_call.1} parent=1 // pred_check_branch
      %41 = sbr.rel (0) target = $region17
    $region16: #{tpu_custom_call.1} parent=1 // pred_region
      %43 = dma.done [#allocation7], 2048
    $region17: #{tpu_custom_call.1} parent=1 // pred_fallthru
      _
    %p44 = scmp.eq.s32.totalorder 0, 0
    // Predicated region
    $region18: #{tpu_custom_call.1} parent=1 // pred_check
      %p45 = pneg %p44
    $region19: #{tpu_custom_call.1} parent=1 // pred_check_branch
      %47 = sbr.rel (%p45) target = $region21
    $region20: #{tpu_custom_call.1} parent=1 // pred_region
      %48 = vst [vmem:[#allocation2] sm:$0xff] 0.0
      %49 = vst [vmem:[#allocation2 + $0x8] sm:$0xff] 0.0
      %50 = vst [vmem:[#allocation2 + $0x10] sm:$0xff] 0.0
      %51 = vst [vmem:[#allocation2 + $0x18] sm:$0xff] 0.0
      %52 = vst [vmem:[#allocation2 + $0x20] sm:$0xff] 0.0
      %53 = vst [vmem:[#allocation2 + $0x28] sm:$0xff] 0.0
      %54 = vst [vmem:[#allocation2 + $0x30] sm:$0xff] 0.0
      %55 = vst [vmem:[#allocation2 + $0x38] sm:$0xff] 0.0
    $region21: #{tpu_custom_call.1} parent=1 // pred_fallthru
      _
    %v56 = vld [vmem:[#allocation2] sm:$0xff]
    %v57 = vld [vmem:[#allocation2 + $0x8] sm:$0xff]
    %v58 = vld [vmem:[#allocation2 + $0x10] sm:$0xff]
    %v59 = vld [vmem:[#allocation2 + $0x18] sm:$0xff]
    %v60 = vld [vmem:[#allocation2 + $0x20] sm:$0xff]
    %v61 = vld [vmem:[#allocation2 + $0x28] sm:$0xff]
    %v62 = vld [vmem:[#allocation2 + $0x30] sm:$0xff]
    %v63 = vld [vmem:[#allocation2 + $0x38] sm:$0xff]
    %v64 = vld [vmem:[#allocation3] sm:$0xf]
    %v65 = vld [vmem:[#allocation3 + $0x4] sm:$0xf]
    %v66 = vld [vmem:[#allocation3 + $0x8] sm:$0xf]
    %v67 = vld [vmem:[#allocation3 + $0xc] sm:$0xf]
    %v68 = vld [vmem:[#allocation6] sm:$0xff]
    %v69 = vld [vmem:[#allocation6 + $0x8] sm:$0xff]
    %v70 = vld [vmem:[#allocation6 + $0x10] sm:$0xff]
    %v71 = vld [vmem:[#allocation6 + $0x18] sm:$0xff]
    %v72 = vld [vmem:[#allocation6 + $0x20] sm:$0xff]
    %v73 = vld [vmem:[#allocation6 + $0x28] sm:$0xff]
    %v74 = vld [vmem:[#allocation6 + $0x30] sm:$0xff]
    %v75 = vld [vmem:[#allocation6 + $0x38] sm:$0xff]
    %v76 = vld [vmem:[#allocation6 + $0x40] sm:$0xff]
    %v77 = vld [vmem:[#allocation6 + $0x48] sm:$0xff]
    %v78 = vld [vmem:[#allocation6 + $0x50] sm:$0xff]
    %v79 = vld [vmem:[#allocation6 + $0x58] sm:$0xff]
    %v80 = vld [vmem:[#allocation6 + $0x60] sm:$0xff]
    %v81 = vld [vmem:[#allocation6 + $0x68] sm:$0xff]
    %v82 = vld [vmem:[#allocation6 + $0x70] sm:$0xff]
    %v83 = vld [vmem:[#allocation6 + $0x78] sm:$0xff]
    %v88 = vunpack.c.l.b16 %v64
    %v89 = vunpack.c.l.b16 %v65
    %v90 = vunpack.c.l.b16 %v66
    %v91 = vunpack.c.l.b16 %v67
    %v92 = vpack.c.b16 %v89, %v88
    %v93 = vpack.c.b16 %v91, %v90
    %v112 = vunpack.c.l.b16 %v68
    %v113 = vunpack.c.h.b16 %v68
    %v114 = vunpack.c.l.b16 %v69
    %v115 = vunpack.c.h.b16 %v69
    %v116 = vunpack.c.l.b16 %v70
    %v117 = vunpack.c.h.b16 %v70
    %v118 = vunpack.c.l.b16 %v71
    %v119 = vunpack.c.h.b16 %v71
    %v120 = vunpack.c.l.b16 %v72
    %v121 = vunpack.c.h.b16 %v72
    %v122 = vunpack.c.l.b16 %v73
    %v123 = vunpack.c.h.b16 %v73
    %v124 = vunpack.c.l.b16 %v74
    %v125 = vunpack.c.h.b16 %v74
    %v126 = vunpack.c.l.b16 %v75
    %v127 = vunpack.c.h.b16 %v75
    %v128 = vunpack.c.l.b16 %v76
    %v129 = vunpack.c.h.b16 %v76
    %v130 = vunpack.c.l.b16 %v77
    %v131 = vunpack.c.h.b16 %v77
    %v132 = vunpack.c.l.b16 %v78
    %v133 = vunpack.c.h.b16 %v78
    %v134 = vunpack.c.l.b16 %v79
    %v135 = vunpack.c.h.b16 %v79
    %v136 = vunpack.c.l.b16 %v80
    %v137 = vunpack.c.h.b16 %v80
    %v138 = vunpack.c.l.b16 %v81
    %v139 = vunpack.c.h.b16 %v81
    %v140 = vunpack.c.l.b16 %v82
    %v141 = vunpack.c.h.b16 %v82
    %v142 = vunpack.c.l.b16 %v83
    %v143 = vunpack.c.h.b16 %v83
    %v144 = vpack.c.b16 %v114, %v112
    %v145 = vpack.c.b16 %v115, %v113
    %v146 = vpack.c.b16 %v118, %v116
    %v147 = vpack.c.b16 %v119, %v117
    %v148 = vpack.c.b16 %v122, %v120
    %v149 = vpack.c.b16 %v123, %v121
    %v150 = vpack.c.b16 %v126, %v124
    %v151 = vpack.c.b16 %v127, %v125
    %v152 = vpack.c.b16 %v130, %v128
    %v153 = vpack.c.b16 %v131, %v129
    %v154 = vpack.c.b16 %v134, %v132
    %v155 = vpack.c.b16 %v135, %v133
    %v156 = vpack.c.b16 %v138, %v136
    %v157 = vpack.c.b16 %v139, %v137
    %v158 = vpack.c.b16 %v142, %v140
    %v159 = vpack.c.b16 %v143, %v141
    %176 = vmatpush.bf16.msra.mxu0 %v158
    %177 = vmatpush.bf16.msra.mxu0 %v156
    %178 = vmatpush.bf16.msra.mxu0 %v154
    %179 = vmatpush.bf16.msra.mxu0 %v152
    %180 = vmatpush.bf16.msra.mxu0 %v150
    %181 = vmatpush.bf16.msra.mxu0 %v148
    %182 = vmatpush.bf16.msra.mxu0 %v146
    %183 = vmatpush.bf16.msra.mxu0 %v144
    %184 = vmatmul.bf16.gmra.mxu0 %v92
    %v185 = vpop.f32.mrf.mxu0
    %v186 = vadd.f32 0.0, %v185
    %v187 = vpop.f32.mrf.mxu0
    %v188 = vadd.f32 0.0, %v187
    %189 = vmatmul.bf16.gmra.mxu0 %v93
    %v190 = vpop.f32.mrf.mxu0
    %v191 = vadd.f32 0.0, %v190
    %v192 = vpop.f32.mrf.mxu0
    %v193 = vadd.f32 0.0, %v192
    %194 = vdwg.mxu0
    %195 = vmatpush.bf16.msra.mxu0 %v159
    %196 = vmatpush.bf16.msra.mxu0 %v157
    %197 = vmatpush.bf16.msra.mxu0 %v155
    %198 = vmatpush.bf16.msra.mxu0 %v153
    %199 = vmatpush.bf16.msra.mxu0 %v151
    %200 = vmatpush.bf16.msra.mxu0 %v149
    %201 = vmatpush.bf16.msra.mxu0 %v147
    %202 = vmatpush.bf16.msra.mxu0 %v145
    %203 = vmatmul.bf16.gmra.mxu0 %v92
    %v204 = vpop.f32.mrf.mxu0
    %v205 = vadd.f32 0.0, %v204
    %v206 = vpop.f32.mrf.mxu0
    %v207 = vadd.f32 0.0, %v206
    %208 = vmatmul.bf16.gmra.mxu0 %v93
    %v209 = vpop.f32.mrf.mxu0
    %v210 = vadd.f32 0.0, %v209
    %v211 = vpop.f32.mrf.mxu0
    %v212 = vadd.f32 0.0, %v211
    %213 = vdwg.mxu0
    %v214 = vadd.f32 %v56, %v186
    %v215 = vadd.f32 %v57, %v205
    %v216 = vadd.f32 %v58, %v188
    %v217 = vadd.f32 %v59, %v207
    %v218 = vadd.f32 %v60, %v191
    %v219 = vadd.f32 %v61, %v210
    %v220 = vadd.f32 %v62, %v193
    %v221 = vadd.f32 %v63, %v212
    %222 = vst [vmem:[#allocation2] sm:$0xff] %v214
    %223 = vst [vmem:[#allocation2 + $0x8] sm:$0xff] %v215
    %224 = vst [vmem:[#allocation2 + $0x10] sm:$0xff] %v216
    %225 = vst [vmem:[#allocation2 + $0x18] sm:$0xff] %v217
    %226 = vst [vmem:[#allocation2 + $0x20] sm:$0xff] %v218
    %227 = vst [vmem:[#allocation2 + $0x28] sm:$0xff] %v219
    %228 = vst [vmem:[#allocation2 + $0x30] sm:$0xff] %v220
    %229 = vst [vmem:[#allocation2 + $0x38] sm:$0xff] %v221
    // Predicated region
    $region22: #{tpu_custom_call.1} parent=1 // pred_check
      %p230 = pneg %p44
    $region23: #{tpu_custom_call.1} parent=1 // pred_check_branch
      %232 = sbr.rel (%p230) target = $region25
    $region24: #{tpu_custom_call.1} parent=1 // pred_region
      %v233 = vld [vmem:[#allocation2] sm:$0xff]
      %v234 = vld [vmem:[#allocation2 + $0x8] sm:$0xff]
      %v235 = vld [vmem:[#allocation2 + $0x10] sm:$0xff]
      %v236 = vld [vmem:[#allocation2 + $0x18] sm:$0xff]
      %v237 = vld [vmem:[#allocation2 + $0x20] sm:$0xff]
      %v238 = vld [vmem:[#allocation2 + $0x28] sm:$0xff]
      %v239 = vld [vmem:[#allocation2 + $0x30] sm:$0xff]
      %v240 = vld [vmem:[#allocation2 + $0x38] sm:$0xff]
      %v241 = vpack.c.bf16 %v234, %v233
      %v242 = vpack.c.bf16 %v236, %v235
      %v243 = vpack.c.bf16 %v238, %v237
      %v244 = vpack.c.bf16 %v240, %v239
      %245 = vst [vmem:[#allocation8] sm:$0xff] %v241
      %246 = vst [vmem:[#allocation8 + $0x8] sm:$0xff] %v242
      %247 = vst [vmem:[#allocation8 + $0x10] sm:$0xff] %v243
      %248 = vst [vmem:[#allocation8 + $0x18] sm:$0xff] %v244
    $region25: #{tpu_custom_call.1} parent=1 // pred_fallthru
      _
    // Predicated region
    $region26: #{tpu_custom_call.1} parent=1 // pred_check
      _
    $region27: #{tpu_custom_call.1} parent=1 // pred_check_branch
      %250 = sbr.rel (0) target = $region29
    $region28: #{tpu_custom_call.1} parent=1 // pred_region
      %252 = vsyncadd [#allocation5], 0
      %s253 = sshll.u32 [#allocation8], 4
      %s254 = int_to_ptr.vmem [resolvable:$true] %s253
      %s255 = sshll.u32 %s2, 4
      %s256 = int_to_ptr.hbm [resolvable:$true] %s255
      %261 = dma.vmem_to_hbm [thread:$0]  %s254, 512, %s256, [#allocation5], 128, 128, 8
    $region29: #{tpu_custom_call.1} parent=1 // pred_fallthru
      _
    // Predicated region
    $region30: #{tpu_custom_call.1} parent=1 // pred_check
      _
    $region31: #{tpu_custom_call.1} parent=1 // pred_check_branch
      %263 = sbr.rel (0) target = $region33
    $region32: #{tpu_custom_call.1} parent=1 // pred_region
      %265 = dma.done [#allocation5], 512
    $region33: #{tpu_custom_call.1} parent=1 // pred_fallthru
      _
    %266 = vsyncpa [#allocation4], 1
    %267 = vsyncpa [#allocation7], 1
    %268 = vsyncpa [#allocation5], 1

</llo_original>
